<compile_context>
chip_gen: v6e
topology: v6e:2x2x1
jax: 0.10.0
libtpu: 0.0.40
codegen_flags: <defaults>
</compile_context>

<pallas_src>
import functools
import math

import jax
import jax.numpy as jnp
from jax.experimental import pallas as pl
from jax.experimental.pallas import tpu as pltpu


def self_attn_kernel(x_ref, v_ref, c_ref, out_ref, w_ref, *, idx):
    # x_ref:   (Bt, 2, N, F)  batch tile of the raw inputs
    # v_ref:   (2, F)         folded vectors [a[:H] @ W, a[H:] @ W]
    # c_ref:   (1,) SMEM      folded scalar  b . (a[:H] + a[H:])
    # out_ref: (Bt, N, F)
    # w_ref:   (Bt, 2, N)     lane-dense weights (N on the lane axis)
    x = x_ref[...]                                              # (Bt, 2, N, F)
    v = v_ref[...]                                              # (2, F)
    c = c_ref[0]                                                # scalar

    v1 = v[0:1, :]                                              # (1, F)
    v2 = v[1:2, :]                                              # (1, F)

    # Attention scores: lane (F) reductions, keepdims keeps N on sublanes so
    # everything below stays in one layout (no relayout around the softmax).
    s_own = jnp.sum(x * v1, axis=-1, keepdims=True)             # (Bt, 2, N, 1)
    s_idx = jnp.sum(x[:, idx] * v2, axis=-1, keepdims=True)     # (Bt, N, 1)
    u = s_own + s_idx[:, None] + c                              # (Bt, 2, N, 1)

    # leaky_relu (slope 0.01), softmax over the K=2 axis, nan -> 0.
    u = jnp.where(u >= 0, u, 0.01 * u)
    m = jnp.max(u, axis=1, keepdims=True)
    e = jnp.exp(u - m)
    w = e / jnp.sum(e, axis=1, keepdims=True)
    w = jnp.where(jnp.isnan(w), jnp.zeros_like(w), w)           # (Bt, 2, N, 1)

    # Weighted combine in the same (N sublane, F lane) layout as the input.
    out_ref[...] = 2.0 * (w[:, 0] * x[:, 0] + w[:, 1] * x[:, 1])

    # Single relayout at the very end: lane-dense weights store.
    w_ref[...] = w[..., 0]                                      # (Bt, 2, N)


def _padded_tile_bytes(bt, K, N, F):
    """Rough VMEM footprint (f32, (8,128)-padded) of one grid step's tiles."""
    n_sub = -(-N // 8) * 8
    f_lane = -(-F // 128) * 128
    k_sub = -(-K // 8) * 8
    n_lane = -(-N // 128) * 128
    in_tile = bt * K * n_sub * f_lane
    out_tile = bt * n_sub * f_lane
    w_tile = bt * k_sub * n_lane
    return 4 * (in_tile + out_tile + w_tile)


def _choose_batch_tile(B, K, N, F, target_bytes=1 << 20):
    """Largest divisor of B whose padded per-step tile is ~<= target_bytes."""
    per_b = _padded_tile_bytes(1, K, N, F)
    bt = int(max(1, min(B, target_bytes // per_b)))
    while B % bt:
        bt -= 1
    return bt


def self_attention_forward(inputs, W, b, a, idx):
    """inputs: (B, 2, N, F) f32; W: (H, F); b: (H,); a: (2H, 1)."""
    B, K, N, F = inputs.shape
    H = W.shape[0]
    assert K == 2

    # Fold the linear layer + attention vector (scores only ever need these).
    a_flat = jnp.reshape(a, (-1,)).astype(jnp.float32)          # (2H,)
    a1, a2 = a_flat[:H], a_flat[H:]
    Wf = jnp.asarray(W, jnp.float32)                            # (H, F)
    bf = jnp.asarray(b, jnp.float32)                            # (H,)
    v = jnp.stack([jnp.dot(a1, Wf), jnp.dot(a2, Wf)], axis=0)   # (2, F)
    c = jnp.reshape(jnp.dot(bf, a1 + a2), (1,)).astype(jnp.float32)  # (1,)

    Bt = _choose_batch_tile(B, K, N, F)
    n_steps = B // Bt

    # Explicit VMEM cap with headroom (safe on v7x's smaller VMEM).
    per_step = _padded_tile_bytes(Bt, K, N, F)
    vmem_limit = int(min(32 << 20, max(16 << 20, 4 * per_step + (1 << 20))))

    kernel = functools.partial(self_attn_kernel, idx=int(idx))

    out, w = pl.pallas_call(
        kernel,
        out_shape=(
            jax.ShapeDtypeStruct((B, N, F), jnp.float32),
            jax.ShapeDtypeStruct((B, K, N), jnp.float32),
        ),
        grid_spec=pltpu.PrefetchScalarGridSpec(
            num_scalar_prefetch=0,
            grid=(n_steps,),
            in_specs=[
                pl.BlockSpec((Bt, K, N, F), lambda g: (g, 0, 0, 0)),   # x tile
                pl.BlockSpec((2, F), lambda g: (0, 0)),                # v1/v2
                pl.BlockSpec(memory_space=pltpu.MemorySpace.SMEM),     # scalar c
            ],
            out_specs=[
                pl.BlockSpec((Bt, N, F), lambda g: (g, 0, 0)),
                pl.BlockSpec((Bt, K, N), lambda g: (g, 0, 0)),
            ],
        ),
        compiler_params=pltpu.CompilerParams(
            dimension_semantics=("parallel",),
            vmem_limit_bytes=vmem_limit,
        ),
    )(inputs.astype(jnp.float32), v, c)

    # Layout plumbing on the tiny weights tensor: (B, 2, N) -> (B, N, 2, 1).
    weights = jnp.transpose(w, (0, 2, 1))[..., None]
    return out, weights


def ref_forward(inputs, W, b, a, idx):
    """Pure-JAX reference mirroring the PyTorch forward (unfolded math)."""
    y = jnp.einsum("bknf,hf->bknh", inputs, W) + b              # linear
    y_idx = jnp.broadcast_to(y[:, idx : idx + 1], y.shape)      # stacked idx copy
    x = jnp.concatenate([y, y_idx], axis=-1)                    # (B, 2, N, 2H)
    u = jnp.einsum("bknh,h->bkn", x, a[:, 0]).transpose(0, 2, 1)  # (B, N, 2)
    u = jnp.where(u >= 0, u, 0.01 * u)
    w = jax.nn.softmax(u, axis=-1)
    w = jnp.where(jnp.isnan(w), 0.0, w)
    out = 2.0 * jnp.einsum("bnk,bknf->bnf", w, inputs)
    return out, w[..., None]


if __name__ == "__main__":
    # Small deterministic shapes consistent with the module:
    #   B = bsz*4 = 8, K = 2, N = n_nodes = 8, F = in_features = 32, H = 16
    B, K, N, F, H = 8, 2, 8, 32, 16
    idx = 0

    key = jax.random.PRNGKey(0)
    k_in, k_w, k_b, k_a = jax.random.split(key, 4)

    inputs = jax.random.normal(k_in, (B, K, N, F), dtype=jnp.float32)

    # Deterministic synthetic parameter init (not a checkpoint load).
    bound_w = 1.0 / math.sqrt(F)
    W = jax.random.uniform(k_w, (H, F), jnp.float32, -bound_w, bound_w)   # Linear.weight
    b = jax.random.uniform(k_b, (H,), jnp.float32, -bound_w, bound_w)     # Linear.bias
    a = jax.random.uniform(k_a, (2 * H, 1), jnp.float32, -1.0, 1.0)       # a (stdv = 1)

    out, weights = self_attention_forward(inputs, W, b, a, idx)
    out = jax.block_until_ready(out)
    weights = jax.block_until_ready(weights)

    ref_out, ref_w = ref_forward(inputs, W, b, a, idx)
    assert out.shape == (B, N, F) and weights.shape == (B, N, 2, 1)
    assert jnp.allclose(out, ref_out, atol=1e-5, rtol=1e-5)
    assert jnp.allclose(weights, ref_w, atol=1e-5, rtol=1e-5)

    print("KERNEL_OK")
</pallas_src>

<mosaic_0001>
module attributes {stable_mosaic.version = 11 : i64} {
  func.func @self_attn_kernel(%arg0: i32, %arg1: memref<8x2x8x32xf32, #tpu.memory_space<vmem>>, %arg2: memref<2x32xf32, #tpu.memory_space<vmem>>, %arg3: memref<1xf32, #tpu.memory_space<smem>>, %arg4: memref<8x8x32xf32, #tpu.memory_space<vmem>>, %arg5: memref<8x2x8xf32, #tpu.memory_space<vmem>>) attributes {dimension_semantics = [#tpu.dimension_semantics<parallel>], iteration_bounds = array<i64: 1>, scalar_prefetch = 0 : i64, scratch_operands = 0 : i64, tpu.core_type = #tpu.core_type<tc>, window_params = [{transform_indices = @transform_0, window_bounds = array<i64: 8, 2, 8, 32>}, {pipeline_mode = #tpu.pipeline_mode<synchronous>, transform_indices = @transform_1, window_bounds = array<i64: 2, 32>}, {transform_indices = @transform_2, window_bounds = array<i64: 1>}, {transform_indices = @transform_3, window_bounds = array<i64: 8, 8, 32>}, {transform_indices = @transform_4, window_bounds = array<i64: 8, 2, 8>}]} {
    %c0 = arith.constant 0 : index
    %c0_0 = arith.constant 0 : index
    %c0_1 = arith.constant 0 : index
    %c0_2 = arith.constant 0 : index
    %0 = vector.load %arg1[%c0, %c0_0, %c0_1, %c0_2] : memref<8x2x8x32xf32, #tpu.memory_space<vmem>>, vector<8x2x8x32xf32>
    %c0_3 = arith.constant 0 : index
    %c0_4 = arith.constant 0 : index
    %1 = vector.load %arg2[%c0_3, %c0_4] : memref<2x32xf32, #tpu.memory_space<vmem>>, vector<2x32xf32>
    %c0_5 = arith.constant 0 : index
    %2 = memref.load %arg3[%c0_5] : memref<1xf32, #tpu.memory_space<smem>>
    %3 = vector.extract_strided_slice %1 {offsets = [0, 0], sizes = [1, 32], strides = [1, 1]} : vector<2x32xf32> to vector<1x32xf32>
    %4 = vector.extract_strided_slice %1 {offsets = [1, 0], sizes = [1, 32], strides = [1, 1]} : vector<2x32xf32> to vector<1x32xf32>
    %5 = vector.shape_cast %3 : vector<1x32xf32> to vector<1x1x1x32xf32>
    %6 = vector.broadcast %5 : vector<1x1x1x32xf32> to vector<8x2x8x32xf32>
    %7 = arith.mulf %0, %6 : vector<8x2x8x32xf32>
    %cst = arith.constant dense<0.000000e+00> : vector<8x2x8xf32>
    %8 = vector.multi_reduction <add>, %7, %cst [3] : vector<8x2x8x32xf32> to vector<8x2x8xf32>
    %9 = vector.shape_cast %8 : vector<8x2x8xf32> to vector<8x2x8x1xf32>
    %10 = vector.extract_strided_slice %0 {offsets = [0, 0, 0, 0], sizes = [8, 1, 8, 32], strides = [1, 1, 1, 1]} : vector<8x2x8x32xf32> to vector<8x1x8x32xf32>
    %11 = vector.shape_cast %10 : vector<8x1x8x32xf32> to vector<8x8x32xf32>
    %12 = vector.shape_cast %4 : vector<1x32xf32> to vector<1x1x32xf32>
    %13 = vector.broadcast %12 : vector<1x1x32xf32> to vector<8x8x32xf32>
    %14 = arith.mulf %11, %13 : vector<8x8x32xf32>
    %cst_6 = arith.constant dense<0.000000e+00> : vector<8x8xf32>
    %15 = vector.multi_reduction <add>, %14, %cst_6 [2] : vector<8x8x32xf32> to vector<8x8xf32>
    %16 = vector.shape_cast %15 : vector<8x8xf32> to vector<8x8x1xf32>
    %17 = vector.shape_cast %16 : vector<8x8x1xf32> to vector<8x1x8x1xf32>
    %18 = vector.broadcast %17 : vector<8x1x8x1xf32> to vector<8x2x8x1xf32>
    %19 = arith.addf %9, %18 : vector<8x2x8x1xf32>
    %20 = vector.broadcast %2 : f32 to vector<8x2x8x1xf32>
    %21 = arith.addf %19, %20 : vector<8x2x8x1xf32>
    %cst_7 = arith.constant 0.000000e+00 : f32
    %22 = vector.broadcast %cst_7 : f32 to vector<8x2x8x1xf32>
    %23 = arith.cmpf oge, %21, %22 : vector<8x2x8x1xf32>
    %cst_8 = arith.constant 0.00999999977 : f32
    %24 = vector.broadcast %cst_8 : f32 to vector<8x2x8x1xf32>
    %25 = arith.mulf %24, %21 : vector<8x2x8x1xf32>
    %26 = arith.select %23, %21, %25 : vector<8x2x8x1xi1>, vector<8x2x8x1xf32>
    %cst_9 = arith.constant dense<0xFF800000> : vector<8x8x1xf32>
    %27 = vector.multi_reduction <maximumf>, %26, %cst_9 [1] : vector<8x2x8x1xf32> to vector<8x8x1xf32>
    %28 = vector.shape_cast %27 : vector<8x8x1xf32> to vector<8x1x8x1xf32>
    %29 = vector.broadcast %28 : vector<8x1x8x1xf32> to vector<8x2x8x1xf32>
    %30 = arith.subf %26, %29 : vector<8x2x8x1xf32>
    %31 = math.exp %30 : vector<8x2x8x1xf32>
    %cst_10 = arith.constant dense<0.000000e+00> : vector<8x8x1xf32>
    %32 = vector.multi_reduction <add>, %31, %cst_10 [1] : vector<8x2x8x1xf32> to vector<8x8x1xf32>
    %33 = vector.shape_cast %32 : vector<8x8x1xf32> to vector<8x1x8x1xf32>
    %34 = vector.broadcast %33 : vector<8x1x8x1xf32> to vector<8x2x8x1xf32>
    %35 = arith.divf %31, %34 : vector<8x2x8x1xf32>
    %36 = arith.cmpf one, %35, %35 : vector<8x2x8x1xf32>
    %cst_11 = arith.constant 0.000000e+00 : f32
    %37 = vector.broadcast %cst_11 : f32 to vector<8x2x8x1xf32>
    %38 = arith.select %36, %37, %35 : vector<8x2x8x1xi1>, vector<8x2x8x1xf32>
    %39 = vector.extract_strided_slice %38 {offsets = [0, 0, 0, 0], sizes = [8, 1, 8, 1], strides = [1, 1, 1, 1]} : vector<8x2x8x1xf32> to vector<8x1x8x1xf32>
    %40 = vector.shape_cast %39 : vector<8x1x8x1xf32> to vector<8x8x1xf32>
    %41 = vector.extract_strided_slice %0 {offsets = [0, 0, 0, 0], sizes = [8, 1, 8, 32], strides = [1, 1, 1, 1]} : vector<8x2x8x32xf32> to vector<8x1x8x32xf32>
    %42 = vector.shape_cast %41 : vector<8x1x8x32xf32> to vector<8x8x32xf32>
    %43 = vector.broadcast %40 : vector<8x8x1xf32> to vector<8x8x32xf32>
    %44 = arith.mulf %43, %42 : vector<8x8x32xf32>
    %45 = vector.extract_strided_slice %38 {offsets = [0, 1, 0, 0], sizes = [8, 1, 8, 1], strides = [1, 1, 1, 1]} : vector<8x2x8x1xf32> to vector<8x1x8x1xf32>
    %46 = vector.shape_cast %45 : vector<8x1x8x1xf32> to vector<8x8x1xf32>
    %47 = vector.extract_strided_slice %0 {offsets = [0, 1, 0, 0], sizes = [8, 1, 8, 32], strides = [1, 1, 1, 1]} : vector<8x2x8x32xf32> to vector<8x1x8x32xf32>
    %48 = vector.shape_cast %47 : vector<8x1x8x32xf32> to vector<8x8x32xf32>
    %49 = vector.broadcast %46 : vector<8x8x1xf32> to vector<8x8x32xf32>
    %50 = arith.mulf %49, %48 : vector<8x8x32xf32>
    %51 = arith.addf %44, %50 : vector<8x8x32xf32>
    %cst_12 = arith.constant 2.000000e+00 : f32
    %52 = vector.broadcast %cst_12 : f32 to vector<8x8x32xf32>
    %53 = arith.mulf %52, %51 : vector<8x8x32xf32>
    %c0_13 = arith.constant 0 : index
    %c0_14 = arith.constant 0 : index
    %c0_15 = arith.constant 0 : index
    %54 = vector.load %arg4[%c0_13, %c0_14, %c0_15] : memref<8x8x32xf32, #tpu.memory_space<vmem>>, vector<8x8x32xf32>
    tpu.vector_store %arg4[%c0_13, %c0_14, %c0_15], %53 {strides = array<i32>} : memref<8x8x32xf32, #tpu.memory_space<vmem>>, vector<8x8x32xf32>,
    %55 = vector.shape_cast %38 : vector<8x2x8x1xf32> to vector<8x2x8xf32>
    %c0_16 = arith.constant 0 : index
    %c0_17 = arith.constant 0 : index
    %c0_18 = arith.constant 0 : index
    %56 = vector.load %arg5[%c0_16, %c0_17, %c0_18] : memref<8x2x8xf32, #tpu.memory_space<vmem>>, vector<8x2x8xf32>
    tpu.vector_store %arg5[%c0_16, %c0_17, %c0_18], %55 {strides = array<i32>} : memref<8x2x8xf32, #tpu.memory_space<vmem>>, vector<8x2x8xf32>,
    return
  }
  func.func @transform_0(%arg0: i32) -> (i32, i32, i32, i32) {
    %c0_i32 = arith.constant 0 : i32
    %c0_i32_0 = arith.constant 0 : i32
    %c0_i32_1 = arith.constant 0 : i32
    %c0_i32_2 = arith.constant 0 : i32
    return %arg0, %c0_i32, %c0_i32_0, %c0_i32_1 : i32, i32, i32, i32
  }
  func.func @transform_1(%arg0: i32) -> (i32, i32) {
    %c0_i32 = arith.constant 0 : i32
    %c0_i32_0 = arith.constant 0 : i32
    %c0_i32_1 = arith.constant 0 : i32
    return %c0_i32, %c0_i32_0 : i32, i32
  }
  func.func @transform_2(%arg0: i32) -> i32 {
    %c0_i32 = arith.constant 0 : i32
    %c0_i32_0 = arith.constant 0 : i32
    return %c0_i32 : i32
  }
  func.func @transform_3(%arg0: i32) -> (i32, i32, i32) {
    %c0_i32 = arith.constant 0 : i32
    %c0_i32_0 = arith.constant 0 : i32
    %c0_i32_1 = arith.constant 0 : i32
    return %arg0, %c0_i32, %c0_i32_0 : i32, i32, i32
  }
  func.func @transform_4(%arg0: i32) -> (i32, i32, i32) {
    %c0_i32 = arith.constant 0 : i32
    %c0_i32_0 = arith.constant 0 : i32
    %c0_i32_1 = arith.constant 0 : i32
    return %arg0, %c0_i32, %c0_i32_0 : i32, i32, i32
  }
}

</mosaic_0001>

<llo_original>
// kernel: tpu_custom_call.1
$region0: #{tpu_custom_call.1}
  #allocation0 [shape = 'u32[]', space=smem, size = 0x4, offset = 0x4, fixed_abs, tag = 'smem constant byte address 0x4 - core index']
  #allocation1 [shape = 'u32[144,128]{1,0:T(1,128)}', space=vmem, size = 0x12000, scoped, tag = 'internal scratch']
  #allocation2 [shape = 'f32[1]{0:T(128)S(6)}', space=smem, size = 0x200, scoped, tag = 'scoped memory for tpu_custom_call.1']
  %s0 = inlined_call_operand.hbm [shape: f32[8,2,8,32], index: 0, kind: input, shape index: {}]
  %s1 = inlined_call_operand.vmem [shape: f32[2,32], index: 1, kind: input, shape index: {}]
  %s2 = inlined_call_operand.<no memory space> [shape: f32[1], index: 2, kind: input, shape index: {}]
  %s3 = inlined_call_operand.hbm [shape: f32[8,8,32], index: 3, kind: output, shape index: {0}]
  %s4 = inlined_call_operand.hbm [shape: f32[8,2,8], index: 4, kind: output, shape index: {1}]
  %5 = xla_tuple %s3, %s4
  %s6 = sld [smem:[#allocation0]]
  $region34: #{tpu_custom_call.1} parent=0
    _
  %s8 = ssub.s32 1, %s6
  %s9 = scalar_select 0, %s8, %s6
  %10 = sst [smem:[#allocation2]] %s2
  $region1: #{tpu_custom_call.1} parent=0
    #allocation3 [shape = 'u8[65536]{0}', space=vmem, size = 0x10000, scoped, tag = 'input window, operand 0, single buffered']
    #allocation4 [shape = 's32[1]{0}', space=sflag, size = 0x4, scoped, tag = 'scoped memory for tpu_custom_call.1']
    #allocation5 [shape = 's32[1]{0}', space=sflag, size = 0x4, scoped, tag = 'scoped memory for tpu_custom_call.1']
    #allocation6 [shape = 'u8[32768]{0}', space=vmem, size = 0x8000, scoped, tag = 'output window, operand 0, single buffered']
    #allocation7 [shape = 'u8[8192]{0}', space=vmem, size = 0x2000, scoped, tag = 'output window, operand 1, single buffered']
    #allocation8 [shape = 's32[1]{0}', space=sflag, size = 0x4, scoped, tag = 'scoped memory for tpu_custom_call.1']
    %11 = vsyncpa [#allocation4], 0
    %12 = vsyncpa [#allocation5], 0
    %13 = vsyncpa [#allocation8], 0
    // Predicated region
    $region2: #{tpu_custom_call.1} parent=1 // pred_check
      _
    $region3: #{tpu_custom_call.1} parent=1 // pred_check_branch
      %15 = sbr.rel (0) target = $region5
    $region4: #{tpu_custom_call.1} parent=1 // pred_region
      %s17 = ssub.s32 2048, 2048
      %18 = vsyncadd [#allocation4], %s17
      %s19 = sshll.u32 [#allocation3], 4
      %s20 = int_to_ptr.vmem [resolvable:$true] %s19
      %25 = dma.hbm_to_vmem [thread:$0]  %s0, 2048, %s20, [#allocation4], 128, 128, 8
    $region5: #{tpu_custom_call.1} parent=1 // pred_fallthru
      _
    // Predicated region
    $region6: #{tpu_custom_call.1} parent=1 // pred_check
      _
    $region7: #{tpu_custom_call.1} parent=1 // pred_check_branch
      %27 = sbr.rel (0) target = $region9
    $region8: #{tpu_custom_call.1} parent=1 // pred_region
      _
    $region9: #{tpu_custom_call.1} parent=1 // pred_fallthru
      _
    // Predicated region
    $region10: #{tpu_custom_call.1} parent=1 // pred_check
      _
    $region11: #{tpu_custom_call.1} parent=1 // pred_check_branch
      %29 = sbr.rel (0) target = $region13
    $region12: #{tpu_custom_call.1} parent=1 // pred_region
      _
    $region13: #{tpu_custom_call.1} parent=1 // pred_fallthru
      _
    // Predicated region
    $region14: #{tpu_custom_call.1} parent=1 // pred_check
      _
    $region15: #{tpu_custom_call.1} parent=1 // pred_check_branch
      %31 = sbr.rel (0) target = $region17
    $region16: #{tpu_custom_call.1} parent=1 // pred_region
      %32 = dma.done [#allocation4], 2048
    $region17: #{tpu_custom_call.1} parent=1 // pred_fallthru
      _
    %v33 = vld [vmem:[#allocation3] sm:$0xff]
    %v34 = vld [vmem:[#allocation3 + $0x8] sm:$0xff]
    %v35 = vld [vmem:[#allocation3 + $0x10] sm:$0xff]
    %v36 = vld [vmem:[#allocation3 + $0x18] sm:$0xff]
    %v37 = vld [vmem:[#allocation3 + $0x20] sm:$0xff]
    %v38 = vld [vmem:[#allocation3 + $0x28] sm:$0xff]
    %v39 = vld [vmem:[#allocation3 + $0x30] sm:$0xff]
    %v40 = vld [vmem:[#allocation3 + $0x38] sm:$0xff]
    %v41 = vld [vmem:[#allocation3 + $0x40] sm:$0xff]
    %v42 = vld [vmem:[#allocation3 + $0x48] sm:$0xff]
    %v43 = vld [vmem:[#allocation3 + $0x50] sm:$0xff]
    %v44 = vld [vmem:[#allocation3 + $0x58] sm:$0xff]
    %v45 = vld [vmem:[#allocation3 + $0x60] sm:$0xff]
    %v46 = vld [vmem:[#allocation3 + $0x68] sm:$0xff]
    %v47 = vld [vmem:[#allocation3 + $0x70] sm:$0xff]
    %v48 = vld [vmem:[#allocation3 + $0x78] sm:$0xff]
    %v49 = vld [vmem:[%s1] sm:$0x3]
    %s50 = sld [smem:[#allocation2]]
    %v51 = vlaneseq
    %v52 = vshrl.u32 %v51, 7
    %v53 = vsub.s32 0, %v52
    %v54 = vrot.slane %v49, %v53
    %v55 = vmul.f32 %v33, %v54
    %v56 = vmul.f32 %v34, %v54
    %v57 = vmul.f32 %v35, %v54
    %v58 = vmul.f32 %v36, %v54
    %v59 = vmul.f32 %v37, %v54
    %v60 = vmul.f32 %v38, %v54
    %v61 = vmul.f32 %v39, %v54
    %v62 = vmul.f32 %v40, %v54
    %v63 = vmul.f32 %v41, %v54
    %v64 = vmul.f32 %v42, %v54
    %v65 = vmul.f32 %v43, %v54
    %v66 = vmul.f32 %v44, %v54
    %v67 = vmul.f32 %v45, %v54
    %v68 = vmul.f32 %v46, %v54
    %v69 = vmul.f32 %v47, %v54
    %v70 = vmul.f32 %v48, %v54
    %vm71 = vcmask 261120
    %v72 = vsel %vm71, %v55, 0.0
    %73 = vadd.xlane.f32.xlu0 %v72
    %v74 = vpop.xlane.xlu0 %73
    %v75 = vsel %vm71, %v56, 0.0
    %76 = vadd.xlane.f32.xlu0 %v75
    %v77 = vpop.xlane.xlu0 %76
    %v78 = vsel %vm71, %v57, 0.0
    %79 = vadd.xlane.f32.xlu0 %v78
    %v80 = vpop.xlane.xlu0 %79
    %v81 = vsel %vm71, %v58, 0.0
    %82 = vadd.xlane.f32.xlu0 %v81
    %v83 = vpop.xlane.xlu0 %82
    %v84 = vsel %vm71, %v59, 0.0
    %85 = vadd.xlane.f32.xlu0 %v84
    %v86 = vpop.xlane.xlu0 %85
    %v87 = vsel %vm71, %v60, 0.0
    %88 = vadd.xlane.f32.xlu0 %v87
    %v89 = vpop.xlane.xlu0 %88
    %v90 = vsel %vm71, %v61, 0.0
    %91 = vadd.xlane.f32.xlu0 %v90
    %v92 = vpop.xlane.xlu0 %91
    %v93 = vsel %vm71, %v62, 0.0
    %94 = vadd.xlane.f32.xlu0 %v93
    %v95 = vpop.xlane.xlu0 %94
    %v96 = vsel %vm71, %v63, 0.0
    %97 = vadd.xlane.f32.xlu0 %v96
    %v98 = vpop.xlane.xlu0 %97
    %v99 = vsel %vm71, %v64, 0.0
    %100 = vadd.xlane.f32.xlu0 %v99
    %v101 = vpop.xlane.xlu0 %100
    %v102 = vsel %vm71, %v65, 0.0
    %103 = vadd.xlane.f32.xlu0 %v102
    %v104 = vpop.xlane.xlu0 %103
    %v105 = vsel %vm71, %v66, 0.0
    %106 = vadd.xlane.f32.xlu0 %v105
    %v107 = vpop.xlane.xlu0 %106
    %v108 = vsel %vm71, %v67, 0.0
    %109 = vadd.xlane.f32.xlu0 %v108
    %v110 = vpop.xlane.xlu0 %109
    %v111 = vsel %vm71, %v68, 0.0
    %112 = vadd.xlane.f32.xlu0 %v111
    %v113 = vpop.xlane.xlu0 %112
    %v114 = vsel %vm71, %v69, 0.0
    %115 = vadd.xlane.f32.xlu0 %v114
    %v116 = vpop.xlane.xlu0 %115
    %v117 = vsel %vm71, %v70, 0.0
    %118 = vadd.xlane.f32.xlu0 %v117
    %v119 = vpop.xlane.xlu0 %118
    %v120 = vlaneseq
    %v121 = vshrl.u32 %v120, 7
    %v122 = vsub.s32 1, %v121
    %v123 = vrot.slane %v49, %v122
    %v124 = vmul.f32 %v33, %v123
    %v125 = vmul.f32 %v35, %v123
    %v126 = vmul.f32 %v37, %v123
    %v127 = vmul.f32 %v39, %v123
    %v128 = vmul.f32 %v41, %v123
    %v129 = vmul.f32 %v43, %v123
    %v130 = vmul.f32 %v45, %v123
    %v131 = vmul.f32 %v47, %v123
    %v132 = vsel %vm71, %v124, 0.0
    %133 = vadd.xlane.f32.xlu0 %v132
    %v134 = vpop.xlane.xlu0 %133
    %v135 = vsel %vm71, %v125, 0.0
    %136 = vadd.xlane.f32.xlu0 %v135
    %v137 = vpop.xlane.xlu0 %136
    %v138 = vsel %vm71, %v126, 0.0
    %139 = vadd.xlane.f32.xlu0 %v138
    %v140 = vpop.xlane.xlu0 %139
    %v141 = vsel %vm71, %v127, 0.0
    %142 = vadd.xlane.f32.xlu0 %v141
    %v143 = vpop.xlane.xlu0 %142
    %v144 = vsel %vm71, %v128, 0.0
    %145 = vadd.xlane.f32.xlu0 %v144
    %v146 = vpop.xlane.xlu0 %145
    %v147 = vsel %vm71, %v129, 0.0
    %148 = vadd.xlane.f32.xlu0 %v147
    %v149 = vpop.xlane.xlu0 %148
    %v150 = vsel %vm71, %v130, 0.0
    %151 = vadd.xlane.f32.xlu0 %v150
    %v152 = vpop.xlane.xlu0 %151
    %v153 = vsel %vm71, %v131, 0.0
    %154 = vadd.xlane.f32.xlu0 %v153
    %v155 = vpop.xlane.xlu0 %154
    %v156 = vadd.f32 %v74, %v134
    %v157 = vadd.f32 %v77, %v134
    %v158 = vadd.f32 %v80, %v137
    %v159 = vadd.f32 %v83, %v137
    %v160 = vadd.f32 %v86, %v140
    %v161 = vadd.f32 %v89, %v140
    %v162 = vadd.f32 %v92, %v143
    %v163 = vadd.f32 %v95, %v143
    %v164 = vadd.f32 %v98, %v146
    %v165 = vadd.f32 %v101, %v146
    %v166 = vadd.f32 %v104, %v149
    %v167 = vadd.f32 %v107, %v149
    %v168 = vadd.f32 %v110, %v152
    %v169 = vadd.f32 %v113, %v152
    %v170 = vadd.f32 %v116, %v155
    %v171 = vadd.f32 %v119, %v155
    %v172 = vstv %s50
    %v173 = vadd.f32 %v156, %v172
    %v174 = vadd.f32 %v157, %v172
    %v175 = vadd.f32 %v158, %v172
    %v176 = vadd.f32 %v159, %v172
    %v177 = vadd.f32 %v160, %v172
    %v178 = vadd.f32 %v161, %v172
    %v179 = vadd.f32 %v162, %v172
    %v180 = vadd.f32 %v163, %v172
    %v181 = vadd.f32 %v164, %v172
    %v182 = vadd.f32 %v165, %v172
    %v183 = vadd.f32 %v166, %v172
    %v184 = vadd.f32 %v167, %v172
    %v185 = vadd.f32 %v168, %v172
    %v186 = vadd.f32 %v169, %v172
    %v187 = vadd.f32 %v170, %v172
    %v188 = vadd.f32 %v171, %v172
    %vm189 = vcmp.ge.f32.partialorder %v173, 0.0
    %vm190 = vcmp.ge.f32.partialorder %v174, 0.0
    %vm191 = vcmp.ge.f32.partialorder %v175, 0.0
    %vm192 = vcmp.ge.f32.partialorder %v176, 0.0
    %vm193 = vcmp.ge.f32.partialorder %v177, 0.0
    %vm194 = vcmp.ge.f32.partialorder %v178, 0.0
    %vm195 = vcmp.ge.f32.partialorder %v179, 0.0
    %vm196 = vcmp.ge.f32.partialorder %v180, 0.0
    %vm197 = vcmp.ge.f32.partialorder %v181, 0.0
    %vm198 = vcmp.ge.f32.partialorder %v182, 0.0
    %vm199 = vcmp.ge.f32.partialorder %v183, 0.0
    %vm200 = vcmp.ge.f32.partialorder %v184, 0.0
    %vm201 = vcmp.ge.f32.partialorder %v185, 0.0
    %vm202 = vcmp.ge.f32.partialorder %v186, 0.0
    %vm203 = vcmp.ge.f32.partialorder %v187, 0.0
    %vm204 = vcmp.ge.f32.partialorder %v188, 0.0
    %v205 = vmul.f32 %v173, 0.01
    %v206 = vmul.f32 %v174, 0.01
    %v207 = vmul.f32 %v175, 0.01
    %v208 = vmul.f32 %v176, 0.01
    %v209 = vmul.f32 %v177, 0.01
    %v210 = vmul.f32 %v178, 0.01
    %v211 = vmul.f32 %v179, 0.01
    %v212 = vmul.f32 %v180, 0.01
    %v213 = vmul.f32 %v181, 0.01
    %v214 = vmul.f32 %v182, 0.01
    %v215 = vmul.f32 %v183, 0.01
    %v216 = vmul.f32 %v184, 0.01
    %v217 = vmul.f32 %v185, 0.01
    %v218 = vmul.f32 %v186, 0.01
    %v219 = vmul.f32 %v187, 0.01
    %v220 = vmul.f32 %v188, 0.01
    %v221 = vsel %vm189, %v173, %v205
    %v222 = vsel %vm190, %v174, %v206
    %v223 = vsel %vm191, %v175, %v207
    %v224 = vsel %vm192, %v176, %v208
    %v225 = vsel %vm193, %v177, %v209
    %v226 = vsel %vm194, %v178, %v210
    %v227 = vsel %vm195, %v179, %v211
    %v228 = vsel %vm196, %v180, %v212
    %v229 = vsel %vm197, %v181, %v213
    %v230 = vsel %vm198, %v182, %v214
    %v231 = vsel %vm199, %v183, %v215
    %v232 = vsel %vm200, %v184, %v216
    %v233 = vsel %vm201, %v185, %v217
    %v234 = vsel %vm202, %v186, %v218
    %v235 = vsel %vm203, %v187, %v219
    %v236 = vsel %vm204, %v188, %v220
    %v237 = vmax.f32 %v221, %v222
    %v238 = vmax.f32 %v223, %v224
    %v239 = vmax.f32 %v225, %v226
    %v240 = vmax.f32 %v227, %v228
    %v241 = vmax.f32 %v229, %v230
    %v242 = vmax.f32 %v231, %v232
    %v243 = vmax.f32 %v233, %v234
    %v244 = vmax.f32 %v235, %v236
    %v245 = vsub.f32 %v221, %v237
    %v246 = vsub.f32 %v222, %v237
    %v247 = vsub.f32 %v223, %v238
    %v248 = vsub.f32 %v224, %v238
    %v249 = vsub.f32 %v225, %v239
    %v250 = vsub.f32 %v226, %v239
    %v251 = vsub.f32 %v227, %v240
    %v252 = vsub.f32 %v228, %v240
    %v253 = vsub.f32 %v229, %v241
    %v254 = vsub.f32 %v230, %v241
    %v255 = vsub.f32 %v231, %v242
    %v256 = vsub.f32 %v232, %v242
    %v257 = vsub.f32 %v233, %v243
    %v258 = vsub.f32 %v234, %v243
    %v259 = vsub.f32 %v235, %v244
    %v260 = vsub.f32 %v236, %v244
    %v261 = vmul.f32 %v245, 1.442695
    %v262 = vpow.pop %v261
    %v263 = vmul.f32 %v246, 1.442695
    %v264 = vpow.pop %v263
    %v265 = vmul.f32 %v247, 1.442695
    %v266 = vpow.pop %v265
    %v267 = vmul.f32 %v248, 1.442695
    %v268 = vpow.pop %v267
    %v269 = vmul.f32 %v249, 1.442695
    %v270 = vpow.pop %v269
    %v271 = vmul.f32 %v250, 1.442695
    %v272 = vpow.pop %v271
    %v273 = vmul.f32 %v251, 1.442695
    %v274 = vpow.pop %v273
    %v275 = vmul.f32 %v252, 1.442695
    %v276 = vpow.pop %v275
    %v277 = vmul.f32 %v253, 1.442695
    %v278 = vpow.pop %v277
    %v279 = vmul.f32 %v254, 1.442695
    %v280 = vpow.pop %v279
    %v281 = vmul.f32 %v255, 1.442695
    %v282 = vpow.pop %v281
    %v283 = vmul.f32 %v256, 1.442695
    %v284 = vpow.pop %v283
    %v285 = vmul.f32 %v257, 1.442695
    %v286 = vpow.pop %v285
    %v287 = vmul.f32 %v258, 1.442695
    %v288 = vpow.pop %v287
    %v289 = vmul.f32 %v259, 1.442695
    %v290 = vpow.pop %v289
    %v291 = vmul.f32 %v260, 1.442695
    %v292 = vpow.pop %v291
    %v293 = vadd.f32 %v262, %v264
    %v294 = vadd.f32 %v266, %v268
    %v295 = vadd.f32 %v270, %v272
    %v296 = vadd.f32 %v274, %v276
    %v297 = vadd.f32 %v278, %v280
    %v298 = vadd.f32 %v282, %v284
    %v299 = vadd.f32 %v286, %v288
    %v300 = vadd.f32 %v290, %v292
    %v301 = vrcp.pop %v293
    %v302 = vmul.f32 %v262, %v301
    %v303 = vmul.f32 %v264, %v301
    %v304 = vrcp.pop %v294
    %v305 = vmul.f32 %v266, %v304
    %v306 = vmul.f32 %v268, %v304
    %v307 = vrcp.pop %v295
    %v308 = vmul.f32 %v270, %v307
    %v309 = vmul.f32 %v272, %v307
    %v310 = vrcp.pop %v296
    %v311 = vmul.f32 %v274, %v310
    %v312 = vmul.f32 %v276, %v310
    %v313 = vrcp.pop %v297
    %v314 = vmul.f32 %v278, %v313
    %v315 = vmul.f32 %v280, %v313
    %v316 = vrcp.pop %v298
    %v317 = vmul.f32 %v282, %v316
    %v318 = vmul.f32 %v284, %v316
    %v319 = vrcp.pop %v299
    %v320 = vmul.f32 %v286, %v319
    %v321 = vmul.f32 %v288, %v319
    %v322 = vrcp.pop %v300
    %v323 = vmul.f32 %v290, %v322
    %v324 = vmul.f32 %v292, %v322
    %vm325 = vcmp.ne.f32.partialorder %v302, %v302
    %vm326 = vcmp.ne.f32.partialorder %v303, %v303
    %vm327 = vcmp.ne.f32.partialorder %v305, %v305
    %vm328 = vcmp.ne.f32.partialorder %v306, %v306
    %vm329 = vcmp.ne.f32.partialorder %v308, %v308
    %vm330 = vcmp.ne.f32.partialorder %v309, %v309
    %vm331 = vcmp.ne.f32.partialorder %v311, %v311
    %vm332 = vcmp.ne.f32.partialorder %v312, %v312
    %vm333 = vcmp.ne.f32.partialorder %v314, %v314
    %vm334 = vcmp.ne.f32.partialorder %v315, %v315
    %vm335 = vcmp.ne.f32.partialorder %v317, %v317
    %vm336 = vcmp.ne.f32.partialorder %v318, %v318
    %vm337 = vcmp.ne.f32.partialorder %v320, %v320
    %vm338 = vcmp.ne.f32.partialorder %v321, %v321
    %vm339 = vcmp.ne.f32.partialorder %v323, %v323
    %vm340 = vcmp.ne.f32.partialorder %v324, %v324
    %v341 = vsel %vm325, 0.0, %v302
    %v342 = vsel %vm326, 0.0, %v303
    %v343 = vsel %vm327, 0.0, %v305
    %v344 = vsel %vm328, 0.0, %v306
    %v345 = vsel %vm329, 0.0, %v308
    %v346 = vsel %vm330, 0.0, %v309
    %v347 = vsel %vm331, 0.0, %v311
    %v348 = vsel %vm332, 0.0, %v312
    %v349 = vsel %vm333, 0.0, %v314
    %v350 = vsel %vm334, 0.0, %v315
    %v351 = vsel %vm335, 0.0, %v317
    %v352 = vsel %vm336, 0.0, %v318
    %v353 = vsel %vm337, 0.0, %v320
    %v354 = vsel %vm338, 0.0, %v321
    %v355 = vsel %vm339, 0.0, %v323
    %v356 = vsel %vm340, 0.0, %v324
    %v357 = vmul.f32 %v341, %v33
    %v358 = vmul.f32 %v343, %v35
    %v359 = vmul.f32 %v345, %v37
    %v360 = vmul.f32 %v347, %v39
    %v361 = vmul.f32 %v349, %v41
    %v362 = vmul.f32 %v351, %v43
    %v363 = vmul.f32 %v353, %v45
    %v364 = vmul.f32 %v355, %v47
    %v365 = vmul.f32 %v342, %v34
    %v366 = vmul.f32 %v344, %v36
    %v367 = vmul.f32 %v346, %v38
    %v368 = vmul.f32 %v348, %v40
    %v369 = vmul.f32 %v350, %v42
    %v370 = vmul.f32 %v352, %v44
    %v371 = vmul.f32 %v354, %v46
    %v372 = vmul.f32 %v356, %v48
    %v373 = vadd.f32 %v357, %v365
    %v374 = vadd.f32 %v358, %v366
    %v375 = vadd.f32 %v359, %v367
    %v376 = vadd.f32 %v360, %v368
    %v377 = vadd.f32 %v361, %v369
    %v378 = vadd.f32 %v362, %v370
    %v379 = vadd.f32 %v363, %v371
    %v380 = vadd.f32 %v364, %v372
    %v381 = vmul.f32 %v373, 2.0
    %v382 = vmul.f32 %v374, 2.0
    %v383 = vmul.f32 %v375, 2.0
    %v384 = vmul.f32 %v376, 2.0
    %v385 = vmul.f32 %v377, 2.0
    %v386 = vmul.f32 %v378, 2.0
    %v387 = vmul.f32 %v379, 2.0
    %v388 = vmul.f32 %v380, 2.0
    %389 = vst.msk [vmem:[#allocation6] sm:$0xff] %vm71, %v381
    %390 = vst.msk [vmem:[#allocation6 + $0x8] sm:$0xff] %vm71, %v382
    %391 = vst.msk [vmem:[#allocation6 + $0x10] sm:$0xff] %vm71, %v383
    %392 = vst.msk [vmem:[#allocation6 + $0x18] sm:$0xff] %vm71, %v384
    %393 = vst.msk [vmem:[#allocation6 + $0x20] sm:$0xff] %vm71, %v385
    %394 = vst.msk [vmem:[#allocation6 + $0x28] sm:$0xff] %vm71, %v386
    %395 = vst.msk [vmem:[#allocation6 + $0x30] sm:$0xff] %vm71, %v387
    %396 = vst.msk [vmem:[#allocation6 + $0x38] sm:$0xff] %vm71, %v388
    %v413 = vlaneseq
    %v414 = vand.u32 %v413, 127
    %v415 = vlaneseq
    %v416 = vshrl.u32 %v415, 7
    %v417 = vsub.s32 %v414, %v416
    %v418 = vrot.slane %v341, %v417
    %v419 = vlaneseq
    %v420 = vshrl.u32 %v419, 7
    %v421 = vsub.s32 %v414, %v420
    %v422 = vrot.slane %v342, %v421
    %v423 = vlaneseq
    %v424 = vshrl.u32 %v423, 7
    %v425 = vsub.s32 %v414, %v424
    %v426 = vrot.slane %v343, %v425
    %v427 = vlaneseq
    %v428 = vshrl.u32 %v427, 7
    %v429 = vsub.s32 %v414, %v428
    %v430 = vrot.slane %v344, %v429
    %v431 = vlaneseq
    %v432 = vshrl.u32 %v431, 7
    %v433 = vsub.s32 %v414, %v432
    %v434 = vrot.slane %v345, %v433
    %v435 = vlaneseq
    %v436 = vshrl.u32 %v435, 7
    %v437 = vsub.s32 %v414, %v436
    %v438 = vrot.slane %v346, %v437
    %v439 = vlaneseq
    %v440 = vshrl.u32 %v439, 7
    %v441 = vsub.s32 %v414, %v440
    %v442 = vrot.slane %v347, %v441
    %v443 = vlaneseq
    %v444 = vshrl.u32 %v443, 7
    %v445 = vsub.s32 %v414, %v444
    %v446 = vrot.slane %v348, %v445
    %v447 = vlaneseq
    %v448 = vshrl.u32 %v447, 7
    %v449 = vsub.s32 %v414, %v448
    %v450 = vrot.slane %v349, %v449
    %v451 = vlaneseq
    %v452 = vshrl.u32 %v451, 7
    %v453 = vsub.s32 %v414, %v452
    %v454 = vrot.slane %v350, %v453
    %v455 = vlaneseq
    %v456 = vshrl.u32 %v455, 7
    %v457 = vsub.s32 %v414, %v456
    %v458 = vrot.slane %v351, %v457
    %v459 = vlaneseq
    %v460 = vshrl.u32 %v459, 7
    %v461 = vsub.s32 %v414, %v460
    %v462 = vrot.slane %v352, %v461
    %v463 = vlaneseq
    %v464 = vshrl.u32 %v463, 7
    %v465 = vsub.s32 %v414, %v464
    %v466 = vrot.slane %v353, %v465
    %v467 = vlaneseq
    %v468 = vshrl.u32 %v467, 7
    %v469 = vsub.s32 %v414, %v468
    %v470 = vrot.slane %v354, %v469
    %v471 = vlaneseq
    %v472 = vshrl.u32 %v471, 7
    %v473 = vsub.s32 %v414, %v472
    %v474 = vrot.slane %v355, %v473
    %v475 = vlaneseq
    %v476 = vshrl.u32 %v475, 7
    %v477 = vsub.s32 %v414, %v476
    %v478 = vrot.slane %v356, %v477
    %vm479 = vcmask 1041409
    %v480 = vsel %vm479, %v422, %v418
    %v481 = vsel %vm479, %v430, %v426
    %v482 = vsel %vm479, %v438, %v434
    %v483 = vsel %vm479, %v446, %v442
    %v484 = vsel %vm479, %v454, %v450
    %v485 = vsel %vm479, %v462, %v458
    %v486 = vsel %vm479, %v470, %v466
    %v487 = vsel %vm479, %v478, %v474
    %vm496 = vcmask 58368
    %497 = vst.msk [vmem:[#allocation7] sm:$0x3] %vm496, %v480
    %498 = vst.msk [vmem:[#allocation7 + $0x2] sm:$0x3] %vm496, %v481
    %499 = vst.msk [vmem:[#allocation7 + $0x4] sm:$0x3] %vm496, %v482
    %500 = vst.msk [vmem:[#allocation7 + $0x6] sm:$0x3] %vm496, %v483
    %501 = vst.msk [vmem:[#allocation7 + $0x8] sm:$0x3] %vm496, %v484
    %502 = vst.msk [vmem:[#allocation7 + $0xa] sm:$0x3] %vm496, %v485
    %503 = vst.msk [vmem:[#allocation7 + $0xc] sm:$0x3] %vm496, %v486
    %504 = vst.msk [vmem:[#allocation7 + $0xe] sm:$0x3] %vm496, %v487
    // Predicated region
    $region18: #{tpu_custom_call.1} parent=1 // pred_check
      _
    $region19: #{tpu_custom_call.1} parent=1 // pred_check_branch
      %506 = sbr.rel (0) target = $region21
    $region20: #{tpu_custom_call.1} parent=1 // pred_region
      %s508 = ssub.s32 1024, 1024
      %509 = vsyncadd [#allocation5], %s508
      %s510 = sshll.u32 [#allocation6], 4
      %s511 = int_to_ptr.vmem [resolvable:$true] %s510
      %516 = dma.vmem_to_hbm [thread:$0]  %s511, 1024, %s3, [#allocation5], 128, 128, 8
    $region21: #{tpu_custom_call.1} parent=1 // pred_fallthru
      _
    // Predicated region
    $region22: #{tpu_custom_call.1} parent=1 // pred_check
      _
    $region23: #{tpu_custom_call.1} parent=1 // pred_check_branch
      %518 = sbr.rel (0) target = $region25
    $region24: #{tpu_custom_call.1} parent=1 // pred_region
      %s520 = ssub.s32 256, 256
      %521 = vsyncadd [#allocation8], %s520
      %s522 = sshll.u32 [#allocation7], 4
      %s523 = int_to_ptr.vmem [resolvable:$true] %s522
      %528 = dma.vmem_to_hbm [thread:$0]  %s523, 256, %s4, [#allocation8], 32, 32, 2
    $region25: #{tpu_custom_call.1} parent=1 // pred_fallthru
      _
    // Predicated region
    $region26: #{tpu_custom_call.1} parent=1 // pred_check
      _
    $region27: #{tpu_custom_call.1} parent=1 // pred_check_branch
      %530 = sbr.rel (0) target = $region29
    $region28: #{tpu_custom_call.1} parent=1 // pred_region
      %531 = dma.done [#allocation5], 1024
    $region29: #{tpu_custom_call.1} parent=1 // pred_fallthru
      _
    // Predicated region
    $region30: #{tpu_custom_call.1} parent=1 // pred_check
      _
    $region31: #{tpu_custom_call.1} parent=1 // pred_check_branch
      %533 = sbr.rel (0) target = $region33
    $region32: #{tpu_custom_call.1} parent=1 // pred_region
      %534 = dma.done [#allocation8], 256
    $region33: #{tpu_custom_call.1} parent=1 // pred_fallthru
      _
    %535 = vsyncpa [#allocation4], 1
    %536 = vsyncpa [#allocation5], 1
    %537 = vsyncpa [#allocation8], 1

</llo_original>
